<compile_context>
chip_gen: v5e
topology: v5e:2x2
jax: 0.10.0
libtpu: 0.0.40
codegen_flags: <defaults>
</compile_context>

<pallas_src>
import functools

import jax
import jax.numpy as jnp
from jax.experimental import pallas as pl
from jax.experimental.pallas import tpu as pltpu

NEG_SLOPE = 0.01  # torch.nn.LeakyReLU default negative_slope


def _round_down(x, m):
    return (x // m) * m


def _sublane_multiple(dtype):
    itemsize = jnp.dtype(dtype).itemsize
    if itemsize >= 4:
        return 8
    if itemsize == 2:
        return 16
    return 32


# ------------------------------------------------------------------
# Pallas kernel: elementwise LeakyReLU on one (tile_rows, cols) block
# ------------------------------------------------------------------
def _leaky_relu_kernel(x_ref, o_ref, *, slope):
    x = x_ref[...]
    o_ref[...] = jnp.where(x >= 0, x, x * slope)


def _leaky_relu_2d(x2d, slope):
    """LeakyReLU over a lane-dense (rows, cols) slab (cols % 128 == 0)."""
    rows, cols = x2d.shape
    dtype = x2d.dtype
    itemsize = jnp.dtype(dtype).itemsize
    sub = _sublane_multiple(dtype)

    # ~4 MiB per block: big enough to amortize per-step overhead, small enough
    # that (1 in + 1 out) double-buffered = 16 MiB fits scoped VMEM on
    # v5e/v6e/v7x (limit raised to 32 MiB below for v5e headroom).
    target_rows = max(sub, (4 * 1024 * 1024) // (cols * itemsize))

    if rows <= sub:
        # Full-dim block: legal even when rows is not a sublane multiple.
        tile_rows = rows
    else:
        # Prefer >= 2 grid steps so the "parallel" axis shards across the two
        # v7x TensorCores instead of collapsing to a 1-step grid.
        grid_min = 2 if rows >= 2 * sub else 1
        cap = pl.cdiv(rows, grid_min)
        tile_rows = max(sub, _round_down(min(target_rows, cap), sub))

    grid = pl.cdiv(rows, tile_rows)  # partial last block is masked by Pallas

    kernel = functools.partial(_leaky_relu_kernel, slope=slope)
    return pl.pallas_call(
        kernel,
        out_shape=jax.ShapeDtypeStruct((rows, cols), dtype),
        grid_spec=pltpu.PrefetchScalarGridSpec(
            num_scalar_prefetch=0,
            grid=(grid,),
            in_specs=[pl.BlockSpec((tile_rows, cols), lambda i: (i, 0))],
            out_specs=pl.BlockSpec((tile_rows, cols), lambda i: (i, 0)),
        ),
        input_output_aliases={0: 0},  # inplace=True in the PyTorch module
        cost_estimate=pl.CostEstimate(
            flops=2 * rows * cols,
            transcendentals=0,
            bytes_accessed=2 * rows * cols * itemsize),
        compiler_params=pltpu.CompilerParams(
            dimension_semantics=("parallel",),
            vmem_limit_bytes=32 * 1024 * 1024),
    )(x2d)


def leaky_relu(x, negative_slope=NEG_SLOPE):
    """LeakyReLU(x) for an arbitrary-shaped array via a tiled Pallas kernel."""
    orig_shape = x.shape
    n = x.size
    if n == 0:
        return x

    # Widest power-of-two lane width (multiple of 128) that exactly divides n
    # -> copy-free reshape, no padding.
    cols = None
    for c in (512, 256, 128):
        if n % c == 0:
            cols = c
            break

    if cols is not None:
        rows = n // cols
        out = _leaky_relu_2d(x.reshape(rows, cols), negative_slope)
        return out.reshape(orig_shape)

    # Ragged n: run the 128-aligned bulk through the kernel and fix the tiny
    # (< 128 element) tail with plain jnp.where -- no full padded copy.
    flat = x.reshape(-1)
    bulk_n = _round_down(n, 128)
    tail = flat[bulk_n:]
    tail = jnp.where(tail >= 0, tail, tail * negative_slope)
    if bulk_n == 0:
        return tail.reshape(orig_shape)
    bulk = _leaky_relu_2d(flat[:bulk_n].reshape(bulk_n // 128, 128),
                          negative_slope)
    return jnp.concatenate([bulk.reshape(-1), tail]).reshape(orig_shape)


class MyActivation:
    """Pallas equivalent of the PyTorch `my_activation` module
    (leaky_relu=True branch; `inplace=True` has no functional effect here)."""

    def __call__(self, x):
        return leaky_relu(x, NEG_SLOPE)


if __name__ == "__main__":
    act = MyActivation()
    fwd = jax.jit(act.__call__)

    def ref(x):
        return jnp.where(x >= 0, x, NEG_SLOPE * x)

    # Small 4-D input (batch=2, channels=4, spatial=16x16), single grid step.
    x_small = jax.random.normal(jax.random.PRNGKey(0), (2, 4, 16, 16),
                                jnp.float32)
    y_small = jax.block_until_ready(fwd(x_small))
    assert y_small.shape == x_small.shape and y_small.dtype == x_small.dtype
    assert bool(jnp.allclose(y_small, ref(x_small), atol=1e-6, rtol=0))

    # Larger input exercising a multi-step pipelined grid (megacore on v7x).
    x_big = jax.random.normal(jax.random.PRNGKey(1), (8, 32, 64, 64),
                              jnp.float32)
    y_big = jax.block_until_ready(fwd(x_big))
    assert bool(jnp.allclose(y_big, ref(x_big), atol=1e-6, rtol=0))
    assert bool(jnp.isfinite(y_big).all())

    # bf16 input (dtype-aware sublane alignment path).
    x_bf16 = jax.random.normal(jax.random.PRNGKey(2), (2, 4, 32, 32),
                               jnp.bfloat16)
    y_bf16 = jax.block_until_ready(fwd(x_bf16))
    assert y_bf16.dtype == jnp.bfloat16
    assert bool(jnp.allclose(y_bf16.astype(jnp.float32),
                             ref(x_bf16.astype(jnp.float32)),
                             atol=1e-2, rtol=0))

    # Ragged size (n not a multiple of 128) -> bulk kernel + jnp.where tail.
    x_rag = jax.random.normal(jax.random.PRNGKey(3), (3, 7, 13), jnp.float32)
    y_rag = jax.block_until_ready(fwd(x_rag))
    assert bool(jnp.allclose(y_rag, ref(x_rag), atol=1e-6, rtol=0))

    print("KERNEL_OK")
</pallas_src>

<mosaic_0001>
module attributes {stable_mosaic.version = 11 : i64} {
  func.func @_leaky_relu_kernel(%arg0: i32, %arg1: memref<4x512xf32, #tpu.memory_space<vmem>>, %arg2: memref<4x512xf32, #tpu.memory_space<vmem>>) attributes {dimension_semantics = [#tpu.dimension_semantics<parallel>], iteration_bounds = array<i64: 1>, scalar_prefetch = 0 : i64, scratch_operands = 0 : i64, tpu.core_type = #tpu.core_type<tc>, window_params = [{transform_indices = @transform_0, window_bounds = array<i64: 4, 512>}, {transform_indices = @transform_1, window_bounds = array<i64: 4, 512>}]} {
    %c0 = arith.constant 0 : index
    %c0_0 = arith.constant 0 : index
    %0 = vector.load %arg1[%c0, %c0_0] : memref<4x512xf32, #tpu.memory_space<vmem>>, vector<4x512xf32>
    %cst = arith.constant 0.000000e+00 : f32
    %1 = vector.broadcast %cst : f32 to vector<4x512xf32>
    %2 = arith.cmpf oge, %0, %1 : vector<4x512xf32>
    %cst_1 = arith.constant 0.00999999977 : f32
    %3 = vector.broadcast %cst_1 : f32 to vector<4x512xf32>
    %4 = arith.mulf %0, %3 : vector<4x512xf32>
    %5 = arith.select %2, %0, %4 : vector<4x512xi1>, vector<4x512xf32>
    %c0_2 = arith.constant 0 : index
    %c0_3 = arith.constant 0 : index
    %6 = vector.load %arg2[%c0_2, %c0_3] : memref<4x512xf32, #tpu.memory_space<vmem>>, vector<4x512xf32>
    tpu.vector_store %arg2[%c0_2, %c0_3], %5 {strides = array<i32>} : memref<4x512xf32, #tpu.memory_space<vmem>>, vector<4x512xf32>,
    return
  }
  func.func @transform_0(%arg0: i32) -> (i32, i32) {
    %c0_i32 = arith.constant 0 : i32
    %c0_i32_0 = arith.constant 0 : i32
    return %arg0, %c0_i32 : i32, i32
  }
  func.func @transform_1(%arg0: i32) -> (i32, i32) {
    %c0_i32 = arith.constant 0 : i32
    %c0_i32_0 = arith.constant 0 : i32
    return %arg0, %c0_i32 : i32, i32
  }
}

</mosaic_0001>

<llo_original>
// kernel: a_call__.1
$region0: #{a_call__.1}
  #allocation0 [shape = 'u32[]', space=smem, size = 0x4, offset = 0x4, fixed_abs, tag = 'smem constant byte address 0x4 - core index']
  #allocation1 [shape = 'u32[72,128]{1,0:T(1,128)}', space=vmem, size = 0x9000, scoped, tag = 'internal scratch']
  %s0 = inlined_call_operand.vmem [shape: f32[4,512], index: 0, kind: input, shape index: {}, may-alias: {0,1}]
  %s1 = inlined_call_operand.vmem [shape: f32[4,512], index: 1, kind: output, shape index: {}, may-alias: {0,1}]
  %s2 = sld [smem:[#allocation0]]
  $region14: #{a_call__.1} parent=0
    _
  %s4 = ssub.s32 1, %s2
  %s5 = scalar_select 0, %s4, %s2
  // Predicated region
  $region2: #{a_call__.1} parent=0 // pred_check
    _
  $region3: #{a_call__.1} parent=0 // pred_check_branch
    %7 = sbr.rel (0) target = $region5
  $region4: #{a_call__.1} parent=0 // pred_region
    _
  $region5: #{a_call__.1} parent=0 // pred_fallthru
    _
  %v8 = vld [vmem:[%s0] sm:$0xff]
  %v9 = vld [vmem:[%s0 + $0x8] sm:$0xff]
  %vm10 = vcmp.ge.f32.partialorder %v8, 0.0
  %vm11 = vcmp.ge.f32.partialorder %v9, 0.0
  %v12 = vmul.f32 %v8, 0.01
  %v13 = vmul.f32 %v9, 0.01
  %v14 = vsel %vm10, %v8, %v12
  %v15 = vsel %vm11, %v9, %v13
  %16 = vst [vmem:[%s1] sm:$0xff] %v14
  %17 = vst [vmem:[%s1 + $0x8] sm:$0xff] %v15
  // Predicated region
  $region6: #{a_call__.1} parent=0 // pred_check
    _
  $region7: #{a_call__.1} parent=0 // pred_check_branch
    %19 = sbr.rel (0) target = $region9
  $region8: #{a_call__.1} parent=0 // pred_region
    _
  $region9: #{a_call__.1} parent=0 // pred_fallthru
    _
  // Predicated region
  $region10: #{a_call__.1} parent=0 // pred_check
    _
  $region11: #{a_call__.1} parent=0 // pred_check_branch
    %21 = sbr.rel (0) target = $region13
  $region12: #{a_call__.1} parent=0 // pred_region
    _
  $region13: #{a_call__.1} parent=0 // pred_fallthru
    _

</llo_original>
